<compile_context>
chip_gen: v6e
topology: v6e:2x2x1
jax: 0.10.0
libtpu: 0.0.40
codegen_flags: <defaults>
</compile_context>

<pallas_src>
import jax
import jax.numpy as jnp
from jax.experimental import pallas as pl
from jax.experimental.pallas import tpu as pltpu

N = 64          # number of synthetic trajectory-latent rows
D = 32          # embed_dim
K = 8           # n_clusters in the KMeans fit
B = 8           # number of lookup indices (table has a single row)
N_ITERS = 5     # Lloyd iterations


# ----------------------------------------------------------------------------
# Single fused kernel (no grid):
#   - deterministic init C0 = X[:K]
#   - N_ITERS Lloyd steps with X and C resident in VMEM/vregs, all math in a
#     (K, N) orientation so no XLU transposes sit on the loop-carried path
#   - emit centroid #2 as the (1, D) embedding table
# ----------------------------------------------------------------------------
def latent_fused_kernel(x_ref, table_ref):
    x = x_ref[...]                                              # (N, D) f32, VMEM-resident

    # Loop invariants hoisted once.
    k_iota = jax.lax.broadcasted_iota(jnp.int32, (K, N), 0)     # (K, N)
    c0 = x[:K, :]                                               # deterministic init

    def lloyd_step(_, c):
        # ||c_k||^2 per centroid, kept as a (K, 1) column (no transpose).
        c2 = jnp.sum(c * c, axis=1, keepdims=True)              # (K, 1)

        # xc_T[k, n] = c[k, :] . x[n, :] — contract the feature axis of both
        # operands directly; result is already (K, N).
        xc_t = jax.lax.dot_general(
            c, x, (((1,), (1,)), ((), ())),
            preferred_element_type=jnp.float32)                 # (K, N)

        # ||x||^2 omitted: constant per row, does not change the argmin over k.
        d_t = c2 - 2.0 * xc_t                                   # (K, N)

        assign = jnp.argmin(d_t, axis=0, keepdims=True)         # (1, N)
        onehot = (assign == k_iota).astype(jnp.float32)         # (K, N)

        # sums[k, :] = sum_n onehot[k, n] * x[n, :] — natural [K,N] x [N,D].
        sums = jax.lax.dot_general(
            onehot, x, (((1,), (0,)), ((), ())),
            preferred_element_type=jnp.float32)                 # (K, D)

        counts = jnp.sum(onehot, axis=1, keepdims=True)         # (K, 1)

        # Divide on the EUP (approx reciprocal); counts are small integers so
        # the ~2^-12 relative error is far inside tolerance.
        new_c = sums * pl.reciprocal(jnp.maximum(counts, 1.0), approx=True)
        # Empty cluster: keep previous centroid (closer to sklearn's behavior
        # than collapsing to the zero vector).
        return jnp.where(counts > 0.0, new_c, c)

    c_final = jax.lax.fori_loop(0, N_ITERS, lloyd_step, c0, unroll=True)  # (K, D)

    # centroid #2 -> 1-row embedding table (num_embeddings = 1).
    table_ref[...] = c_final[2:3, :]                            # (1, D)


def latent_forward(x, ids):
    # `ids` kept for interface parity with nn.Embedding(num_embeddings=1);
    # every valid id is 0 for a one-row table, so the "gather" is a broadcast
    # done in plain XLA (free) rather than inside the kernel.
    assert ids.shape == (B,) and ids.dtype == jnp.int32
    table = pl.pallas_call(
        latent_fused_kernel,
        in_specs=[pl.BlockSpec(memory_space=pltpu.MemorySpace.VMEM)],
        out_specs=pl.BlockSpec(memory_space=pltpu.MemorySpace.VMEM),
        out_shape=jax.ShapeDtypeStruct((1, D), jnp.float32),    # embedding table
    )(x)
    lookup = jnp.broadcast_to(table, (B, D))                    # single-row lookup
    return table, lookup


if __name__ == "__main__":
    key = jax.random.PRNGKey(0)
    kc, kn = jax.random.split(key)

    # Synthetic, deterministic stand-in for torch.load(traj_path).weight:
    # K well-separated blobs so the Lloyd iterations are well conditioned and
    # the first-K init puts one seed in each cluster.
    centers = jax.random.normal(kc, (K, D), dtype=jnp.float32)
    labels = jnp.arange(N, dtype=jnp.int32) % K
    x = centers[labels] + 0.02 * jax.random.normal(kn, (N, D), dtype=jnp.float32)

    ids = jnp.zeros((B,), dtype=jnp.int32)   # only valid index for a 1-row table

    table, out = latent_forward(x, ids)
    table, out = jax.block_until_ready((table, out))

    # Pure-JAX reference (same init + Lloyd updates), matmul-free so it stays
    # in plain f32 VPU arithmetic.
    def kmeans_reference(pts):
        c = pts[:K]
        for _ in range(N_ITERS):
            dd = jnp.sum((pts[:, None, :] - c[None, :, :]) ** 2, axis=-1)   # (N, K)
            a = jnp.argmin(dd, axis=1)
            oh = jax.nn.one_hot(a, K, dtype=jnp.float32)
            counts = jnp.sum(oh, axis=0)
            sums = jnp.sum(oh[:, :, None] * pts[:, None, :], axis=0)
            new_c = sums / jnp.maximum(counts, 1.0)[:, None]
            c = jnp.where(counts[:, None] > 0.0, new_c, c)
        return c

    expected_table = kmeans_reference(x)[2:3, :]

    assert table.shape == (1, D) and out.shape == (B, D)
    assert float(jnp.max(jnp.abs(table - expected_table))) < 5e-2
    assert bool(jnp.allclose(out, jnp.broadcast_to(table, (B, D)), atol=1e-6))

    print("KERNEL_OK")
</pallas_src>

<mosaic_0001>
module attributes {stable_mosaic.version = 11 : i64} {
  func.func @latent_fused_kernel(%arg0: memref<64x32xf32, #tpu.memory_space<vmem>>, %arg1: memref<1x32xf32, #tpu.memory_space<vmem>>) attributes {dimension_semantics = [], scalar_prefetch = 0 : i64, scratch_operands = 0 : i64, tpu.core_type = #tpu.core_type<tc>} {
    %c0 = arith.constant 0 : index
    %c0_0 = arith.constant 0 : index
    %0 = vector.load %arg0[%c0, %c0_0] : memref<64x32xf32, #tpu.memory_space<vmem>>, vector<64x32xf32>
    %1 = tpu.iota {dimensions = array<i32: 0>} : vector<8x64xi32>
    %2 = vector.extract_strided_slice %0 {offsets = [0, 0], sizes = [8, 32], strides = [1, 1]} : vector<64x32xf32> to vector<8x32xf32>
    %c0_i32 = arith.constant 0 : i32
    %3 = arith.mulf %2, %2 : vector<8x32xf32>
    %cst = arith.constant dense<0.000000e+00> : vector<8xf32>
    %4 = vector.multi_reduction <add>, %3, %cst [1] : vector<8x32xf32> to vector<8xf32>
    %5 = vector.shape_cast %4 : vector<8xf32> to vector<8x1xf32>
    %cst_1 = arith.constant dense<0.000000e+00> : vector<8x64xf32>
    %6 = tpu.matmul %2, %0, %cst_1 {dimension_numbers = #tpu.dot_dimension_numbers<[1], [1], [0], [0], [0, 0, 1, 0], [], []>} : vector<8x32xf32>, vector<64x32xf32>, vector<8x64xf32> -> vector<8x64xf32>
    %cst_2 = arith.constant 2.000000e+00 : f32
    %7 = vector.broadcast %cst_2 : f32 to vector<8x64xf32>
    %8 = arith.mulf %7, %6 : vector<8x64xf32>
    %9 = vector.broadcast %5 : vector<8x1xf32> to vector<8x64xf32>
    %10 = arith.subf %9, %8 : vector<8x64xf32>
    %11 = tpu.reduce_index %10 {axis = 0 : i32, kind = #tpu.reduction_kind<arg_min>} : vector<8x64xf32> -> vector<64xi32>
    %12 = vector.shape_cast %11 : vector<64xi32> to vector<1x64xi32>
    %13 = vector.broadcast %12 : vector<1x64xi32> to vector<8x64xi32>
    %14 = arith.cmpi eq, %13, %1 : vector<8x64xi32>
    %15 = arith.extui %14 : vector<8x64xi1> to vector<8x64xi32>
    %16 = arith.sitofp %15 : vector<8x64xi32> to vector<8x64xf32>
    %cst_3 = arith.constant dense<0.000000e+00> : vector<8x32xf32>
    %17 = tpu.matmul %16, %0, %cst_3 {dimension_numbers = #tpu.dot_dimension_numbers<[1], [0], [0], [1], [0, 0, 1, 1], [], []>} : vector<8x64xf32>, vector<64x32xf32>, vector<8x32xf32> -> vector<8x32xf32>
    %cst_4 = arith.constant dense<0.000000e+00> : vector<8xf32>
    %18 = vector.multi_reduction <add>, %16, %cst_4 [1] : vector<8x64xf32> to vector<8xf32>
    %19 = vector.shape_cast %18 : vector<8xf32> to vector<8x1xf32>
    %cst_5 = arith.constant 1.000000e+00 : f32
    %20 = vector.broadcast %cst_5 : f32 to vector<8x1xf32>
    %21 = arith.maximumf %19, %20 : vector<8x1xf32>
    %22 = tpu.reciprocal %21 {approx = true} : vector<8x1xf32> -> vector<8x1xf32>
    %23 = vector.broadcast %22 : vector<8x1xf32> to vector<8x32xf32>
    %24 = arith.mulf %17, %23 : vector<8x32xf32>
    %cst_6 = arith.constant 0.000000e+00 : f32
    %25 = vector.broadcast %cst_6 : f32 to vector<8x1xf32>
    %26 = arith.cmpf ogt, %19, %25 : vector<8x1xf32>
    %27 = vector.shape_cast %26 : vector<8x1xi1> to vector<8x1xi1>
    %28 = vector.broadcast %27 : vector<8x1xi1> to vector<8x32xi1>
    %29 = arith.select %28, %24, %2 : vector<8x32xi1>, vector<8x32xf32>
    %c1_i32 = arith.constant 1 : i32
    %30 = arith.mulf %29, %29 : vector<8x32xf32>
    %cst_7 = arith.constant dense<0.000000e+00> : vector<8xf32>
    %31 = vector.multi_reduction <add>, %30, %cst_7 [1] : vector<8x32xf32> to vector<8xf32>
    %32 = vector.shape_cast %31 : vector<8xf32> to vector<8x1xf32>
    %cst_8 = arith.constant dense<0.000000e+00> : vector<8x64xf32>
    %33 = tpu.matmul %29, %0, %cst_8 {dimension_numbers = #tpu.dot_dimension_numbers<[1], [1], [0], [0], [0, 0, 1, 0], [], []>} : vector<8x32xf32>, vector<64x32xf32>, vector<8x64xf32> -> vector<8x64xf32>
    %cst_9 = arith.constant 2.000000e+00 : f32
    %34 = vector.broadcast %cst_9 : f32 to vector<8x64xf32>
    %35 = arith.mulf %34, %33 : vector<8x64xf32>
    %36 = vector.broadcast %32 : vector<8x1xf32> to vector<8x64xf32>
    %37 = arith.subf %36, %35 : vector<8x64xf32>
    %38 = tpu.reduce_index %37 {axis = 0 : i32, kind = #tpu.reduction_kind<arg_min>} : vector<8x64xf32> -> vector<64xi32>
    %39 = vector.shape_cast %38 : vector<64xi32> to vector<1x64xi32>
    %40 = vector.broadcast %39 : vector<1x64xi32> to vector<8x64xi32>
    %41 = arith.cmpi eq, %40, %1 : vector<8x64xi32>
    %42 = arith.extui %41 : vector<8x64xi1> to vector<8x64xi32>
    %43 = arith.sitofp %42 : vector<8x64xi32> to vector<8x64xf32>
    %cst_10 = arith.constant dense<0.000000e+00> : vector<8x32xf32>
    %44 = tpu.matmul %43, %0, %cst_10 {dimension_numbers = #tpu.dot_dimension_numbers<[1], [0], [0], [1], [0, 0, 1, 1], [], []>} : vector<8x64xf32>, vector<64x32xf32>, vector<8x32xf32> -> vector<8x32xf32>
    %cst_11 = arith.constant dense<0.000000e+00> : vector<8xf32>
    %45 = vector.multi_reduction <add>, %43, %cst_11 [1] : vector<8x64xf32> to vector<8xf32>
    %46 = vector.shape_cast %45 : vector<8xf32> to vector<8x1xf32>
    %cst_12 = arith.constant 1.000000e+00 : f32
    %47 = vector.broadcast %cst_12 : f32 to vector<8x1xf32>
    %48 = arith.maximumf %46, %47 : vector<8x1xf32>
    %49 = tpu.reciprocal %48 {approx = true} : vector<8x1xf32> -> vector<8x1xf32>
    %50 = vector.broadcast %49 : vector<8x1xf32> to vector<8x32xf32>
    %51 = arith.mulf %44, %50 : vector<8x32xf32>
    %cst_13 = arith.constant 0.000000e+00 : f32
    %52 = vector.broadcast %cst_13 : f32 to vector<8x1xf32>
    %53 = arith.cmpf ogt, %46, %52 : vector<8x1xf32>
    %54 = vector.shape_cast %53 : vector<8x1xi1> to vector<8x1xi1>
    %55 = vector.broadcast %54 : vector<8x1xi1> to vector<8x32xi1>
    %56 = arith.select %55, %51, %29 : vector<8x32xi1>, vector<8x32xf32>
    %c2_i32 = arith.constant 2 : i32
    %57 = arith.mulf %56, %56 : vector<8x32xf32>
    %cst_14 = arith.constant dense<0.000000e+00> : vector<8xf32>
    %58 = vector.multi_reduction <add>, %57, %cst_14 [1] : vector<8x32xf32> to vector<8xf32>
    %59 = vector.shape_cast %58 : vector<8xf32> to vector<8x1xf32>
    %cst_15 = arith.constant dense<0.000000e+00> : vector<8x64xf32>
    %60 = tpu.matmul %56, %0, %cst_15 {dimension_numbers = #tpu.dot_dimension_numbers<[1], [1], [0], [0], [0, 0, 1, 0], [], []>} : vector<8x32xf32>, vector<64x32xf32>, vector<8x64xf32> -> vector<8x64xf32>
    %cst_16 = arith.constant 2.000000e+00 : f32
    %61 = vector.broadcast %cst_16 : f32 to vector<8x64xf32>
    %62 = arith.mulf %61, %60 : vector<8x64xf32>
    %63 = vector.broadcast %59 : vector<8x1xf32> to vector<8x64xf32>
    %64 = arith.subf %63, %62 : vector<8x64xf32>
    %65 = tpu.reduce_index %64 {axis = 0 : i32, kind = #tpu.reduction_kind<arg_min>} : vector<8x64xf32> -> vector<64xi32>
    %66 = vector.shape_cast %65 : vector<64xi32> to vector<1x64xi32>
    %67 = vector.broadcast %66 : vector<1x64xi32> to vector<8x64xi32>
    %68 = arith.cmpi eq, %67, %1 : vector<8x64xi32>
    %69 = arith.extui %68 : vector<8x64xi1> to vector<8x64xi32>
    %70 = arith.sitofp %69 : vector<8x64xi32> to vector<8x64xf32>
    %cst_17 = arith.constant dense<0.000000e+00> : vector<8x32xf32>
    %71 = tpu.matmul %70, %0, %cst_17 {dimension_numbers = #tpu.dot_dimension_numbers<[1], [0], [0], [1], [0, 0, 1, 1], [], []>} : vector<8x64xf32>, vector<64x32xf32>, vector<8x32xf32> -> vector<8x32xf32>
    %cst_18 = arith.constant dense<0.000000e+00> : vector<8xf32>
    %72 = vector.multi_reduction <add>, %70, %cst_18 [1] : vector<8x64xf32> to vector<8xf32>
    %73 = vector.shape_cast %72 : vector<8xf32> to vector<8x1xf32>
    %cst_19 = arith.constant 1.000000e+00 : f32
    %74 = vector.broadcast %cst_19 : f32 to vector<8x1xf32>
    %75 = arith.maximumf %73, %74 : vector<8x1xf32>
    %76 = tpu.reciprocal %75 {approx = true} : vector<8x1xf32> -> vector<8x1xf32>
    %77 = vector.broadcast %76 : vector<8x1xf32> to vector<8x32xf32>
    %78 = arith.mulf %71, %77 : vector<8x32xf32>
    %cst_20 = arith.constant 0.000000e+00 : f32
    %79 = vector.broadcast %cst_20 : f32 to vector<8x1xf32>
    %80 = arith.cmpf ogt, %73, %79 : vector<8x1xf32>
    %81 = vector.shape_cast %80 : vector<8x1xi1> to vector<8x1xi1>
    %82 = vector.broadcast %81 : vector<8x1xi1> to vector<8x32xi1>
    %83 = arith.select %82, %78, %56 : vector<8x32xi1>, vector<8x32xf32>
    %c3_i32 = arith.constant 3 : i32
    %84 = arith.mulf %83, %83 : vector<8x32xf32>
    %cst_21 = arith.constant dense<0.000000e+00> : vector<8xf32>
    %85 = vector.multi_reduction <add>, %84, %cst_21 [1] : vector<8x32xf32> to vector<8xf32>
    %86 = vector.shape_cast %85 : vector<8xf32> to vector<8x1xf32>
    %cst_22 = arith.constant dense<0.000000e+00> : vector<8x64xf32>
    %87 = tpu.matmul %83, %0, %cst_22 {dimension_numbers = #tpu.dot_dimension_numbers<[1], [1], [0], [0], [0, 0, 1, 0], [], []>} : vector<8x32xf32>, vector<64x32xf32>, vector<8x64xf32> -> vector<8x64xf32>
    %cst_23 = arith.constant 2.000000e+00 : f32
    %88 = vector.broadcast %cst_23 : f32 to vector<8x64xf32>
    %89 = arith.mulf %88, %87 : vector<8x64xf32>
    %90 = vector.broadcast %86 : vector<8x1xf32> to vector<8x64xf32>
    %91 = arith.subf %90, %89 : vector<8x64xf32>
    %92 = tpu.reduce_index %91 {axis = 0 : i32, kind = #tpu.reduction_kind<arg_min>} : vector<8x64xf32> -> vector<64xi32>
    %93 = vector.shape_cast %92 : vector<64xi32> to vector<1x64xi32>
    %94 = vector.broadcast %93 : vector<1x64xi32> to vector<8x64xi32>
    %95 = arith.cmpi eq, %94, %1 : vector<8x64xi32>
    %96 = arith.extui %95 : vector<8x64xi1> to vector<8x64xi32>
    %97 = arith.sitofp %96 : vector<8x64xi32> to vector<8x64xf32>
    %cst_24 = arith.constant dense<0.000000e+00> : vector<8x32xf32>
    %98 = tpu.matmul %97, %0, %cst_24 {dimension_numbers = #tpu.dot_dimension_numbers<[1], [0], [0], [1], [0, 0, 1, 1], [], []>} : vector<8x64xf32>, vector<64x32xf32>, vector<8x32xf32> -> vector<8x32xf32>
    %cst_25 = arith.constant dense<0.000000e+00> : vector<8xf32>
    %99 = vector.multi_reduction <add>, %97, %cst_25 [1] : vector<8x64xf32> to vector<8xf32>
    %100 = vector.shape_cast %99 : vector<8xf32> to vector<8x1xf32>
    %cst_26 = arith.constant 1.000000e+00 : f32
    %101 = vector.broadcast %cst_26 : f32 to vector<8x1xf32>
    %102 = arith.maximumf %100, %101 : vector<8x1xf32>
    %103 = tpu.reciprocal %102 {approx = true} : vector<8x1xf32> -> vector<8x1xf32>
    %104 = vector.broadcast %103 : vector<8x1xf32> to vector<8x32xf32>
    %105 = arith.mulf %98, %104 : vector<8x32xf32>
    %cst_27 = arith.constant 0.000000e+00 : f32
    %106 = vector.broadcast %cst_27 : f32 to vector<8x1xf32>
    %107 = arith.cmpf ogt, %100, %106 : vector<8x1xf32>
    %108 = vector.shape_cast %107 : vector<8x1xi1> to vector<8x1xi1>
    %109 = vector.broadcast %108 : vector<8x1xi1> to vector<8x32xi1>
    %110 = arith.select %109, %105, %83 : vector<8x32xi1>, vector<8x32xf32>
    %c4_i32 = arith.constant 4 : i32
    %111 = arith.mulf %110, %110 : vector<8x32xf32>
    %cst_28 = arith.constant dense<0.000000e+00> : vector<8xf32>
    %112 = vector.multi_reduction <add>, %111, %cst_28 [1] : vector<8x32xf32> to vector<8xf32>
    %113 = vector.shape_cast %112 : vector<8xf32> to vector<8x1xf32>
    %cst_29 = arith.constant dense<0.000000e+00> : vector<8x64xf32>
    %114 = tpu.matmul %110, %0, %cst_29 {dimension_numbers = #tpu.dot_dimension_numbers<[1], [1], [0], [0], [0, 0, 1, 0], [], []>} : vector<8x32xf32>, vector<64x32xf32>, vector<8x64xf32> -> vector<8x64xf32>
    %cst_30 = arith.constant 2.000000e+00 : f32
    %115 = vector.broadcast %cst_30 : f32 to vector<8x64xf32>
    %116 = arith.mulf %115, %114 : vector<8x64xf32>
    %117 = vector.broadcast %113 : vector<8x1xf32> to vector<8x64xf32>
    %118 = arith.subf %117, %116 : vector<8x64xf32>
    %119 = tpu.reduce_index %118 {axis = 0 : i32, kind = #tpu.reduction_kind<arg_min>} : vector<8x64xf32> -> vector<64xi32>
    %120 = vector.shape_cast %119 : vector<64xi32> to vector<1x64xi32>
    %121 = vector.broadcast %120 : vector<1x64xi32> to vector<8x64xi32>
    %122 = arith.cmpi eq, %121, %1 : vector<8x64xi32>
    %123 = arith.extui %122 : vector<8x64xi1> to vector<8x64xi32>
    %124 = arith.sitofp %123 : vector<8x64xi32> to vector<8x64xf32>
    %cst_31 = arith.constant dense<0.000000e+00> : vector<8x32xf32>
    %125 = tpu.matmul %124, %0, %cst_31 {dimension_numbers = #tpu.dot_dimension_numbers<[1], [0], [0], [1], [0, 0, 1, 1], [], []>} : vector<8x64xf32>, vector<64x32xf32>, vector<8x32xf32> -> vector<8x32xf32>
    %cst_32 = arith.constant dense<0.000000e+00> : vector<8xf32>
    %126 = vector.multi_reduction <add>, %124, %cst_32 [1] : vector<8x64xf32> to vector<8xf32>
    %127 = vector.shape_cast %126 : vector<8xf32> to vector<8x1xf32>
    %cst_33 = arith.constant 1.000000e+00 : f32
    %128 = vector.broadcast %cst_33 : f32 to vector<8x1xf32>
    %129 = arith.maximumf %127, %128 : vector<8x1xf32>
    %130 = tpu.reciprocal %129 {approx = true} : vector<8x1xf32> -> vector<8x1xf32>
    %131 = vector.broadcast %130 : vector<8x1xf32> to vector<8x32xf32>
    %132 = arith.mulf %125, %131 : vector<8x32xf32>
    %cst_34 = arith.constant 0.000000e+00 : f32
    %133 = vector.broadcast %cst_34 : f32 to vector<8x1xf32>
    %134 = arith.cmpf ogt, %127, %133 : vector<8x1xf32>
    %135 = vector.shape_cast %134 : vector<8x1xi1> to vector<8x1xi1>
    %136 = vector.broadcast %135 : vector<8x1xi1> to vector<8x32xi1>
    %137 = arith.select %136, %132, %110 : vector<8x32xi1>, vector<8x32xf32>
    %138 = vector.extract_strided_slice %137 {offsets = [2, 0], sizes = [1, 32], strides = [1, 1]} : vector<8x32xf32> to vector<1x32xf32>
    %c0_35 = arith.constant 0 : index
    %c0_36 = arith.constant 0 : index
    %139 = vector.load %arg1[%c0_35, %c0_36] : memref<1x32xf32, #tpu.memory_space<vmem>>, vector<1x32xf32>
    tpu.vector_store %arg1[%c0_35, %c0_36], %138 {strides = array<i32>} : memref<1x32xf32, #tpu.memory_space<vmem>>, vector<1x32xf32>,
    return
  }
}

</mosaic_0001>

<llo_original>
// kernel: tpu_custom_call.1
$region0: #{tpu_custom_call.1}
  #allocation0 [shape = 'u32[]', space=smem, size = 0x4, offset = 0x4, fixed_abs, tag = 'smem constant byte address 0x4 - core index']
  #allocation1 [shape = 'u32[144,128]{1,0:T(1,128)}', space=vmem, size = 0x12000, scoped, tag = 'internal scratch']
  %s0 = inlined_call_operand.vmem [shape: f32[64,32], index: 0, kind: input, shape index: {}]
  %s1 = inlined_call_operand.hbm [shape: f32[1,32], index: 1, kind: output, shape index: {}]
  %s2 = sld [smem:[#allocation0]]
  $region14: #{tpu_custom_call.1} parent=0
    _
  %s4 = ssub.s32 1, %s2
  %s5 = scalar_select 0, %s4, %s2
  $region1: #{tpu_custom_call.1} parent=0
    #allocation2 [shape = 'u8[512]{0}', space=vmem, size = 0x400, scoped, tag = 'output window, operand 0, single buffered']
    #allocation3 [shape = 's32[1]{0}', space=sflag, size = 0x4, scoped, tag = 'scoped memory for tpu_custom_call.1']
    %6 = vsyncpa [#allocation3], 0
    // Predicated region
    $region2: #{tpu_custom_call.1} parent=1 // pred_check
      _
    $region3: #{tpu_custom_call.1} parent=1 // pred_check_branch
      %8 = sbr.rel (0) target = $region5
    $region4: #{tpu_custom_call.1} parent=1 // pred_region
      _
    $region5: #{tpu_custom_call.1} parent=1 // pred_fallthru
      _
    %v9 = vld [vmem:[%s0] sm:$0xff]
    %v10 = vld [vmem:[%s0 + $0x8] sm:$0xff]
    %v11 = vld [vmem:[%s0 + $0x10] sm:$0xff]
    %v12 = vld [vmem:[%s0 + $0x18] sm:$0xff]
    %v13 = vld [vmem:[%s0 + $0x20] sm:$0xff]
    %v14 = vld [vmem:[%s0 + $0x28] sm:$0xff]
    %v15 = vld [vmem:[%s0 + $0x30] sm:$0xff]
    %v16 = vld [vmem:[%s0 + $0x38] sm:$0xff]
    %v17 = vlaneseq
    %v18 = vshrl.u32 %v17, 7
    %v19 = vmul.f32 %v9, %v9
    %vm20 = vcmask 261120
    %v21 = vsel %vm20, %v19, 0.0
    %22 = vadd.xlane.f32.xlu0 %v21
    %v23 = vpop.xlane.xlu0 %22
    %v25 = vsel %vm20, %v9, 0
    %v28 = vsel %vm20, %v10, 0
    %v31 = vsel %vm20, %v11, 0
    %v34 = vsel %vm20, %v12, 0
    %v37 = vsel %vm20, %v13, 0
    %v40 = vsel %vm20, %v14, 0
    %v43 = vsel %vm20, %v15, 0
    %v46 = vsel %vm20, %v16, 0
    %48 = vmatprep.subr.mxu0 0.0
    %49 = vmatpush1.xpose.msra.mxu0 0.0
    %50 = vmatprep.subr.mxu0 0.0
    %51 = vmatpush1.xpose.msra.mxu0 0.0
    %52 = vmatprep.subr.mxu0 0.0
    %53 = vmatpush1.xpose.msra.mxu0 0.0
    %54 = vmatprep.subr.mxu0 0.0
    %55 = vmatpush1.xpose.msra.mxu0 0.0
    %56 = vmatprep.subr.mxu0 0.0
    %57 = vmatpush1.xpose.msra.mxu0 0.0
    %58 = vmatprep.subr.mxu0 0.0
    %59 = vmatpush1.xpose.msra.mxu0 0.0
    %60 = vmatprep.subr.mxu0 0.0
    %61 = vmatpush1.xpose.msra.mxu0 0.0
    %62 = vmatprep.subr.mxu0 0.0
    %63 = vmatpush1.xpose.msra.mxu0 0.0
    %64 = vmatprep.subr.mxu0 0.0
    %65 = vmatpush1.xpose.msra.mxu0 %v46
    %66 = vmatprep.subr.mxu0 0.0
    %67 = vmatpush1.xpose.msra.mxu0 %v43
    %68 = vmatprep.subr.mxu0 0.0
    %69 = vmatpush1.xpose.msra.mxu0 %v40
    %70 = vmatprep.subr.mxu0 0.0
    %71 = vmatpush1.xpose.msra.mxu0 %v37
    %72 = vmatprep.subr.mxu0 0.0
    %73 = vmatpush1.xpose.msra.mxu0 %v34
    %74 = vmatprep.subr.mxu0 0.0
    %75 = vmatpush1.xpose.msra.mxu0 %v31
    %76 = vmatprep.subr.mxu0 0.0
    %77 = vmatpush1.xpose.msra.mxu0 %v28
    %78 = vmatprep.subr.mxu0 0.0
    %79 = vmatpush1.xpose.msra.mxu0 %v25
    %80 = vmatprep.subr.mxu0 0.0
    %81 = vmatpush2.xpose.msra.mxu0 0.0
    %82 = vmatprep.subr.mxu0 0.0
    %83 = vmatpush2.xpose.msra.mxu0 0.0
    %84 = vmatprep.subr.mxu0 0.0
    %85 = vmatpush2.xpose.msra.mxu0 0.0
    %86 = vmatprep.subr.mxu0 0.0
    %87 = vmatpush2.xpose.msra.mxu0 0.0
    %88 = vmatprep.subr.mxu0 0.0
    %89 = vmatpush2.xpose.msra.mxu0 0.0
    %90 = vmatprep.subr.mxu0 0.0
    %91 = vmatpush2.xpose.msra.mxu0 0.0
    %92 = vmatprep.subr.mxu0 0.0
    %93 = vmatpush2.xpose.msra.mxu0 0.0
    %94 = vmatprep.subr.mxu0 0.0
    %95 = vmatpush2.xpose.msra.mxu0 0.0
    %96 = vmatprep.subr.mxu0 0.0
    %97 = vmatpush2.xpose.msra.mxu0 0.0
    %98 = vmatprep.subr.mxu0 0.0
    %99 = vmatpush2.xpose.msra.mxu0 0.0
    %100 = vmatprep.subr.mxu0 0.0
    %101 = vmatpush2.xpose.msra.mxu0 0.0
    %102 = vmatprep.subr.mxu0 0.0
    %103 = vmatpush2.xpose.msra.mxu0 0.0
    %104 = vmatprep.subr.mxu0 0.0
    %105 = vmatpush2.xpose.msra.mxu0 0.0
    %106 = vmatprep.subr.mxu0 0.0
    %107 = vmatpush2.xpose.msra.mxu0 0.0
    %108 = vmatprep.subr.mxu0 0.0
    %109 = vmatpush2.xpose.msra.mxu0 0.0
    %110 = vmatprep.subr.mxu0 0.0
    %111 = vmatpush2.xpose.msra.mxu0 0.0
    %112 = vmatprep.mubr.f32.mxu0 0.0
    %113 = vmatmul.mubr.f32.gmra.mxu0 %v25
    %v114 = vpop.f32.mrf.mxu0
    %v115 = vadd.f32 0.0, %v114
    %v116 = vpop.f32.mrf.mxu0
    %117 = vdwg.mxu0
    %v118 = vmul.f32 %v115, 2.0
    %v119 = vsub.f32 %v23, %v118
    %vm120 = vcmask 523264
    %v121 = vsel %vm120, %v119, inf
    %v122 = vrot.slane %v121, 4
    %v123 = vrot.slane %v18, 4
    %vm124 = vcmp.le.f32.partialorder %v121, %v122
    %v125 = vsel %vm124, %v121, %v122
    %v126 = vsel %vm124, %v18, %v123
    %v127 = vrot.slane %v125, 6
    %v128 = vrot.slane %v126, 6
    %vm129 = vcmp.le.f32.partialorder %v125, %v127
    %v130 = vsel %vm129, %v125, %v127
    %v131 = vsel %vm129, %v126, %v128
    %v132 = vrot.slane %v130, 7
    %v133 = vrot.slane %v131, 7
    %vm134 = vcmp.le.f32.partialorder %v130, %v132
    %v135 = vsel %vm134, %v131, %v133
    %v136 = vlaneseq
    %v137 = vshrl.u32 %v136, 7
    %v138 = vsub.s32 0, %v137
    %v139 = vrot.slane %v135, %v138
    %vm140 = vcmp.eq.s32.totalorder %v139, %v18
    %v141 = vsel %vm140, 1, 0
    %v142 = vcvt.s32.f32 %v141
    %v144 = vsel %vm120, %v142, 0
    %146 = vmatprep.subr.mxu0 0.0
    %147 = vmatpush1.msra.mxu0 0.0
    %148 = vmatprep.subr.mxu0 0.0
    %149 = vmatpush1.msra.mxu0 0.0
    %150 = vmatprep.subr.mxu0 0.0
    %151 = vmatpush1.msra.mxu0 0.0
    %152 = vmatprep.subr.mxu0 0.0
    %153 = vmatpush1.msra.mxu0 0.0
    %154 = vmatprep.subr.mxu0 0.0
    %155 = vmatpush1.msra.mxu0 0.0
    %156 = vmatprep.subr.mxu0 0.0
    %157 = vmatpush1.msra.mxu0 0.0
    %158 = vmatprep.subr.mxu0 0.0
    %159 = vmatpush1.msra.mxu0 0.0
    %160 = vmatprep.subr.mxu0 0.0
    %161 = vmatpush1.msra.mxu0 0.0
    %162 = vmatprep.subr.mxu0 0.0
    %163 = vmatpush1.msra.mxu0 %v16
    %164 = vmatprep.subr.mxu0 0.0
    %165 = vmatpush1.msra.mxu0 %v15
    %166 = vmatprep.subr.mxu0 0.0
    %167 = vmatpush1.msra.mxu0 %v14
    %168 = vmatprep.subr.mxu0 0.0
    %169 = vmatpush1.msra.mxu0 %v13
    %170 = vmatprep.subr.mxu0 0.0
    %171 = vmatpush1.msra.mxu0 %v12
    %172 = vmatprep.subr.mxu0 0.0
    %173 = vmatpush1.msra.mxu0 %v11
    %174 = vmatprep.subr.mxu0 0.0
    %175 = vmatpush1.msra.mxu0 %v10
    %176 = vmatprep.subr.mxu0 0.0
    %177 = vmatpush1.msra.mxu0 %v9
    %178 = vmatprep.subr.mxu0 0.0
    %179 = vmatpush2.msra.mxu0 0.0
    %180 = vmatprep.subr.mxu0 0.0
    %181 = vmatpush2.msra.mxu0 0.0
    %182 = vmatprep.subr.mxu0 0.0
    %183 = vmatpush2.msra.mxu0 0.0
    %184 = vmatprep.subr.mxu0 0.0
    %185 = vmatpush2.msra.mxu0 0.0
    %186 = vmatprep.subr.mxu0 0.0
    %187 = vmatpush2.msra.mxu0 0.0
    %188 = vmatprep.subr.mxu0 0.0
    %189 = vmatpush2.msra.mxu0 0.0
    %190 = vmatprep.subr.mxu0 0.0
    %191 = vmatpush2.msra.mxu0 0.0
    %192 = vmatprep.subr.mxu0 0.0
    %193 = vmatpush2.msra.mxu0 0.0
    %194 = vmatprep.subr.mxu0 0.0
    %195 = vmatpush2.msra.mxu0 0.0
    %196 = vmatprep.subr.mxu0 0.0
    %197 = vmatpush2.msra.mxu0 0.0
    %198 = vmatprep.subr.mxu0 0.0
    %199 = vmatpush2.msra.mxu0 0.0
    %200 = vmatprep.subr.mxu0 0.0
    %201 = vmatpush2.msra.mxu0 0.0
    %202 = vmatprep.subr.mxu0 0.0
    %203 = vmatpush2.msra.mxu0 0.0
    %204 = vmatprep.subr.mxu0 0.0
    %205 = vmatpush2.msra.mxu0 0.0
    %206 = vmatprep.subr.mxu0 0.0
    %207 = vmatpush2.msra.mxu0 0.0
    %208 = vmatprep.subr.mxu0 0.0
    %209 = vmatpush2.msra.mxu0 0.0
    %210 = vmatprep.mubr.f32.mxu0 0.0
    %211 = vmatmul.mubr.f32.gmra.mxu0 %v144
    %v212 = vpop.f32.mrf.mxu0
    %v213 = vadd.f32 0.0, %v212
    %v214 = vpop.f32.mrf.mxu0
    %215 = vdwg.mxu0
    %v216 = vsel %vm120, %v142, 0.0
    %217 = vadd.xlane.f32.xlu0 %v216
    %v218 = vpop.xlane.xlu0 %217
    %v219 = vmax.f32 %v218, 1.0
    %v220 = vrcp.pop %v219
    %v221 = vmul.f32 %v213, %v220
    %vm222 = vcmp.gt.f32.partialorder %v218, 0.0
    %v223 = vsel %vm222, 1, 0
    %vm224 = vcmp.eq.s32.totalorder %v223, 1
    %v225 = vsel %vm224, %v221, %v9
    %v226 = vmul.f32 %v225, %v225
    %v227 = vsel %vm20, %v226, 0.0
    %228 = vadd.xlane.f32.xlu0 %v227
    %v229 = vpop.xlane.xlu0 %228
    %v231 = vsel %vm20, %v225, 0
    %233 = vmatprep.subr.mxu0 0.0
    %234 = vmatpush1.xpose.msra.mxu0 0.0
    %235 = vmatprep.subr.mxu0 0.0
    %236 = vmatpush1.xpose.msra.mxu0 0.0
    %237 = vmatprep.subr.mxu0 0.0
    %238 = vmatpush1.xpose.msra.mxu0 0.0
    %239 = vmatprep.subr.mxu0 0.0
    %240 = vmatpush1.xpose.msra.mxu0 0.0
    %241 = vmatprep.subr.mxu0 0.0
    %242 = vmatpush1.xpose.msra.mxu0 0.0
    %243 = vmatprep.subr.mxu0 0.0
    %244 = vmatpush1.xpose.msra.mxu0 0.0
    %245 = vmatprep.subr.mxu0 0.0
    %246 = vmatpush1.xpose.msra.mxu0 0.0
    %247 = vmatprep.subr.mxu0 0.0
    %248 = vmatpush1.xpose.msra.mxu0 0.0
    %249 = vmatprep.subr.mxu0 0.0
    %250 = vmatpush1.xpose.msra.mxu0 %v46
    %251 = vmatprep.subr.mxu0 0.0
    %252 = vmatpush1.xpose.msra.mxu0 %v43
    %253 = vmatprep.subr.mxu0 0.0
    %254 = vmatpush1.xpose.msra.mxu0 %v40
    %255 = vmatprep.subr.mxu0 0.0
    %256 = vmatpush1.xpose.msra.mxu0 %v37
    %257 = vmatprep.subr.mxu0 0.0
    %258 = vmatpush1.xpose.msra.mxu0 %v34
    %259 = vmatprep.subr.mxu0 0.0
    %260 = vmatpush1.xpose.msra.mxu0 %v31
    %261 = vmatprep.subr.mxu0 0.0
    %262 = vmatpush1.xpose.msra.mxu0 %v28
    %263 = vmatprep.subr.mxu0 0.0
    %264 = vmatpush1.xpose.msra.mxu0 %v25
    %265 = vmatprep.subr.mxu0 0.0
    %266 = vmatpush2.xpose.msra.mxu0 0.0
    %267 = vmatprep.subr.mxu0 0.0
    %268 = vmatpush2.xpose.msra.mxu0 0.0
    %269 = vmatprep.subr.mxu0 0.0
    %270 = vmatpush2.xpose.msra.mxu0 0.0
    %271 = vmatprep.subr.mxu0 0.0
    %272 = vmatpush2.xpose.msra.mxu0 0.0
    %273 = vmatprep.subr.mxu0 0.0
    %274 = vmatpush2.xpose.msra.mxu0 0.0
    %275 = vmatprep.subr.mxu0 0.0
    %276 = vmatpush2.xpose.msra.mxu0 0.0
    %277 = vmatprep.subr.mxu0 0.0
    %278 = vmatpush2.xpose.msra.mxu0 0.0
    %279 = vmatprep.subr.mxu0 0.0
    %280 = vmatpush2.xpose.msra.mxu0 0.0
    %281 = vmatprep.subr.mxu0 0.0
    %282 = vmatpush2.xpose.msra.mxu0 0.0
    %283 = vmatprep.subr.mxu0 0.0
    %284 = vmatpush2.xpose.msra.mxu0 0.0
    %285 = vmatprep.subr.mxu0 0.0
    %286 = vmatpush2.xpose.msra.mxu0 0.0
    %287 = vmatprep.subr.mxu0 0.0
    %288 = vmatpush2.xpose.msra.mxu0 0.0
    %289 = vmatprep.subr.mxu0 0.0
    %290 = vmatpush2.xpose.msra.mxu0 0.0
    %291 = vmatprep.subr.mxu0 0.0
    %292 = vmatpush2.xpose.msra.mxu0 0.0
    %293 = vmatprep.subr.mxu0 0.0
    %294 = vmatpush2.xpose.msra.mxu0 0.0
    %295 = vmatprep.subr.mxu0 0.0
    %296 = vmatpush2.xpose.msra.mxu0 0.0
    %297 = vmatprep.mubr.f32.mxu0 0.0
    %298 = vmatmul.mubr.f32.gmra.mxu0 %v231
    %v299 = vpop.f32.mrf.mxu0
    %v300 = vadd.f32 0.0, %v299
    %v301 = vpop.f32.mrf.mxu0
    %302 = vdwg.mxu0
    %v303 = vmul.f32 %v300, 2.0
    %v304 = vsub.f32 %v229, %v303
    %v305 = vsel %vm120, %v304, inf
    %v306 = vrot.slane %v305, 4
    %vm307 = vcmp.le.f32.partialorder %v305, %v306
    %v308 = vsel %vm307, %v305, %v306
    %v309 = vsel %vm307, %v18, %v123
    %v310 = vrot.slane %v308, 6
    %v311 = vrot.slane %v309, 6
    %vm312 = vcmp.le.f32.partialorder %v308, %v310
    %v313 = vsel %vm312, %v308, %v310
    %v314 = vsel %vm312, %v309, %v311
    %v315 = vrot.slane %v313, 7
    %v316 = vrot.slane %v314, 7
    %vm317 = vcmp.le.f32.partialorder %v313, %v315
    %v318 = vsel %vm317, %v314, %v316
    %v319 = vlaneseq
    %v320 = vshrl.u32 %v319, 7
    %v321 = vsub.s32 0, %v320
    %v322 = vrot.slane %v318, %v321
    %vm323 = vcmp.eq.s32.totalorder %v322, %v18
    %v324 = vsel %vm323, 1, 0
    %v325 = vcvt.s32.f32 %v324
    %v327 = vsel %vm120, %v325, 0
    %329 = vmatprep.subr.mxu0 0.0
    %330 = vmatpush1.msra.mxu0 0.0
    %331 = vmatprep.subr.mxu0 0.0
    %332 = vmatpush1.msra.mxu0 0.0
    %333 = vmatprep.subr.mxu0 0.0
    %334 = vmatpush1.msra.mxu0 0.0
    %335 = vmatprep.subr.mxu0 0.0
    %336 = vmatpush1.msra.mxu0 0.0
    %337 = vmatprep.subr.mxu0 0.0
    %338 = vmatpush1.msra.mxu0 0.0
    %339 = vmatprep.subr.mxu0 0.0
    %340 = vmatpush1.msra.mxu0 0.0
    %341 = vmatprep.subr.mxu0 0.0
    %342 = vmatpush1.msra.mxu0 0.0
    %343 = vmatprep.subr.mxu0 0.0
    %344 = vmatpush1.msra.mxu0 0.0
    %345 = vmatprep.subr.mxu0 0.0
    %346 = vmatpush1.msra.mxu0 %v16
    %347 = vmatprep.subr.mxu0 0.0
    %348 = vmatpush1.msra.mxu0 %v15
    %349 = vmatprep.subr.mxu0 0.0
    %350 = vmatpush1.msra.mxu0 %v14
    %351 = vmatprep.subr.mxu0 0.0
    %352 = vmatpush1.msra.mxu0 %v13
    %353 = vmatprep.subr.mxu0 0.0
    %354 = vmatpush1.msra.mxu0 %v12
    %355 = vmatprep.subr.mxu0 0.0
    %356 = vmatpush1.msra.mxu0 %v11
    %357 = vmatprep.subr.mxu0 0.0
    %358 = vmatpush1.msra.mxu0 %v10
    %359 = vmatprep.subr.mxu0 0.0
    %360 = vmatpush1.msra.mxu0 %v9
    %361 = vmatprep.subr.mxu0 0.0
    %362 = vmatpush2.msra.mxu0 0.0
    %363 = vmatprep.subr.mxu0 0.0
    %364 = vmatpush2.msra.mxu0 0.0
    %365 = vmatprep.subr.mxu0 0.0
    %366 = vmatpush2.msra.mxu0 0.0
    %367 = vmatprep.subr.mxu0 0.0
    %368 = vmatpush2.msra.mxu0 0.0
    %369 = vmatprep.subr.mxu0 0.0
    %370 = vmatpush2.msra.mxu0 0.0
    %371 = vmatprep.subr.mxu0 0.0
    %372 = vmatpush2.msra.mxu0 0.0
    %373 = vmatprep.subr.mxu0 0.0
    %374 = vmatpush2.msra.mxu0 0.0
    %375 = vmatprep.subr.mxu0 0.0
    %376 = vmatpush2.msra.mxu0 0.0
    %377 = vmatprep.subr.mxu0 0.0
    %378 = vmatpush2.msra.mxu0 0.0
    %379 = vmatprep.subr.mxu0 0.0
    %380 = vmatpush2.msra.mxu0 0.0
    %381 = vmatprep.subr.mxu0 0.0
    %382 = vmatpush2.msra.mxu0 0.0
    %383 = vmatprep.subr.mxu0 0.0
    %384 = vmatpush2.msra.mxu0 0.0
    %385 = vmatprep.subr.mxu0 0.0
    %386 = vmatpush2.msra.mxu0 0.0
    %387 = vmatprep.subr.mxu0 0.0
    %388 = vmatpush2.msra.mxu0 0.0
    %389 = vmatprep.subr.mxu0 0.0
    %390 = vmatpush2.msra.mxu0 0.0
    %391 = vmatprep.subr.mxu0 0.0
    %392 = vmatpush2.msra.mxu0 0.0
    %393 = vmatprep.mubr.f32.mxu0 0.0
    %394 = vmatmul.mubr.f32.gmra.mxu0 %v327
    %v395 = vpop.f32.mrf.mxu0
    %v396 = vadd.f32 0.0, %v395
    %v397 = vpop.f32.mrf.mxu0
    %398 = vdwg.mxu0
    %v399 = vsel %vm120, %v325, 0.0
    %400 = vadd.xlane.f32.xlu0 %v399
    %v401 = vpop.xlane.xlu0 %400
    %v402 = vmax.f32 %v401, 1.0
    %v403 = vrcp.pop %v402
    %v404 = vmul.f32 %v396, %v403
    %vm405 = vcmp.gt.f32.partialorder %v401, 0.0
    %v406 = vsel %vm405, 1, 0
    %vm407 = vcmp.eq.s32.totalorder %v406, 1
    %v408 = vsel %vm407, %v404, %v225
    %v409 = vmul.f32 %v408, %v408
    %v410 = vsel %vm20, %v409, 0.0
    %411 = vadd.xlane.f32.xlu0 %v410
    %v412 = vpop.xlane.xlu0 %411
    %v414 = vsel %vm20, %v408, 0
    %416 = vmatprep.subr.mxu0 0.0
    %417 = vmatpush1.xpose.msra.mxu0 0.0
    %418 = vmatprep.subr.mxu0 0.0
    %419 = vmatpush1.xpose.msra.mxu0 0.0
    %420 = vmatprep.subr.mxu0 0.0
    %421 = vmatpush1.xpose.msra.mxu0 0.0
    %422 = vmatprep.subr.mxu0 0.0
    %423 = vmatpush1.xpose.msra.mxu0 0.0
    %424 = vmatprep.subr.mxu0 0.0
    %425 = vmatpush1.xpose.msra.mxu0 0.0
    %426 = vmatprep.subr.mxu0 0.0
    %427 = vmatpush1.xpose.msra.mxu0 0.0
    %428 = vmatprep.subr.mxu0 0.0
    %429 = vmatpush1.xpose.msra.mxu0 0.0
    %430 = vmatprep.subr.mxu0 0.0
    %431 = vmatpush1.xpose.msra.mxu0 0.0
    %432 = vmatprep.subr.mxu0 0.0
    %433 = vmatpush1.xpose.msra.mxu0 %v46
    %434 = vmatprep.subr.mxu0 0.0
    %435 = vmatpush1.xpose.msra.mxu0 %v43
    %436 = vmatprep.subr.mxu0 0.0
    %437 = vmatpush1.xpose.msra.mxu0 %v40
    %438 = vmatprep.subr.mxu0 0.0
    %439 = vmatpush1.xpose.msra.mxu0 %v37
    %440 = vmatprep.subr.mxu0 0.0
    %441 = vmatpush1.xpose.msra.mxu0 %v34
    %442 = vmatprep.subr.mxu0 0.0
    %443 = vmatpush1.xpose.msra.mxu0 %v31
    %444 = vmatprep.subr.mxu0 0.0
    %445 = vmatpush1.xpose.msra.mxu0 %v28
    %446 = vmatprep.subr.mxu0 0.0
    %447 = vmatpush1.xpose.msra.mxu0 %v25
    %448 = vmatprep.subr.mxu0 0.0
    %449 = vmatpush2.xpose.msra.mxu0 0.0
    %450 = vmatprep.subr.mxu0 0.0
    %451 = vmatpush2.xpose.msra.mxu0 0.0
    %452 = vmatprep.subr.mxu0 0.0
    %453 = vmatpush2.xpose.msra.mxu0 0.0
    %454 = vmatprep.subr.mxu0 0.0
    %455 = vmatpush2.xpose.msra.mxu0 0.0
    %456 = vmatprep.subr.mxu0 0.0
    %457 = vmatpush2.xpose.msra.mxu0 0.0
    %458 = vmatprep.subr.mxu0 0.0
    %459 = vmatpush2.xpose.msra.mxu0 0.0
    %460 = vmatprep.subr.mxu0 0.0
    %461 = vmatpush2.xpose.msra.mxu0 0.0
    %462 = vmatprep.subr.mxu0 0.0
    %463 = vmatpush2.xpose.msra.mxu0 0.0
    %464 = vmatprep.subr.mxu0 0.0
    %465 = vmatpush2.xpose.msra.mxu0 0.0
    %466 = vmatprep.subr.mxu0 0.0
    %467 = vmatpush2.xpose.msra.mxu0 0.0
    %468 = vmatprep.subr.mxu0 0.0
    %469 = vmatpush2.xpose.msra.mxu0 0.0
    %470 = vmatprep.subr.mxu0 0.0
    %471 = vmatpush2.xpose.msra.mxu0 0.0
    %472 = vmatprep.subr.mxu0 0.0
    %473 = vmatpush2.xpose.msra.mxu0 0.0
    %474 = vmatprep.subr.mxu0 0.0
    %475 = vmatpush2.xpose.msra.mxu0 0.0
    %476 = vmatprep.subr.mxu0 0.0
    %477 = vmatpush2.xpose.msra.mxu0 0.0
    %478 = vmatprep.subr.mxu0 0.0
    %479 = vmatpush2.xpose.msra.mxu0 0.0
    %480 = vmatprep.mubr.f32.mxu0 0.0
    %481 = vmatmul.mubr.f32.gmra.mxu0 %v414
    %v482 = vpop.f32.mrf.mxu0
    %v483 = vadd.f32 0.0, %v482
    %v484 = vpop.f32.mrf.mxu0
    %485 = vdwg.mxu0
    %v486 = vmul.f32 %v483, 2.0
    %v487 = vsub.f32 %v412, %v486
    %v488 = vsel %vm120, %v487, inf
    %v489 = vrot.slane %v488, 4
    %vm490 = vcmp.le.f32.partialorder %v488, %v489
    %v491 = vsel %vm490, %v488, %v489
    %v492 = vsel %vm490, %v18, %v123
    %v493 = vrot.slane %v491, 6
    %v494 = vrot.slane %v492, 6
    %vm495 = vcmp.le.f32.partialorder %v491, %v493
    %v496 = vsel %vm495, %v491, %v493
    %v497 = vsel %vm495, %v492, %v494
    %v498 = vrot.slane %v496, 7
    %v499 = vrot.slane %v497, 7
    %vm500 = vcmp.le.f32.partialorder %v496, %v498
    %v501 = vsel %vm500, %v497, %v499
    %v502 = vlaneseq
    %v503 = vshrl.u32 %v502, 7
    %v504 = vsub.s32 0, %v503
    %v505 = vrot.slane %v501, %v504
    %vm506 = vcmp.eq.s32.totalorder %v505, %v18
    %v507 = vsel %vm506, 1, 0
    %v508 = vcvt.s32.f32 %v507
    %v510 = vsel %vm120, %v508, 0
    %512 = vmatprep.subr.mxu0 0.0
    %513 = vmatpush1.msra.mxu0 0.0
    %514 = vmatprep.subr.mxu0 0.0
    %515 = vmatpush1.msra.mxu0 0.0
    %516 = vmatprep.subr.mxu0 0.0
    %517 = vmatpush1.msra.mxu0 0.0
    %518 = vmatprep.subr.mxu0 0.0
    %519 = vmatpush1.msra.mxu0 0.0
    %520 = vmatprep.subr.mxu0 0.0
    %521 = vmatpush1.msra.mxu0 0.0
    %522 = vmatprep.subr.mxu0 0.0
    %523 = vmatpush1.msra.mxu0 0.0
    %524 = vmatprep.subr.mxu0 0.0
    %525 = vmatpush1.msra.mxu0 0.0
    %526 = vmatprep.subr.mxu0 0.0
    %527 = vmatpush1.msra.mxu0 0.0
    %528 = vmatprep.subr.mxu0 0.0
    %529 = vmatpush1.msra.mxu0 %v16
    %530 = vmatprep.subr.mxu0 0.0
    %531 = vmatpush1.msra.mxu0 %v15
    %532 = vmatprep.subr.mxu0 0.0
    %533 = vmatpush1.msra.mxu0 %v14
    %534 = vmatprep.subr.mxu0 0.0
    %535 = vmatpush1.msra.mxu0 %v13
    %536 = vmatprep.subr.mxu0 0.0
    %537 = vmatpush1.msra.mxu0 %v12
    %538 = vmatprep.subr.mxu0 0.0
    %539 = vmatpush1.msra.mxu0 %v11
    %540 = vmatprep.subr.mxu0 0.0
    %541 = vmatpush1.msra.mxu0 %v10
    %542 = vmatprep.subr.mxu0 0.0
    %543 = vmatpush1.msra.mxu0 %v9
    %544 = vmatprep.subr.mxu0 0.0
    %545 = vmatpush2.msra.mxu0 0.0
    %546 = vmatprep.subr.mxu0 0.0
    %547 = vmatpush2.msra.mxu0 0.0
    %548 = vmatprep.subr.mxu0 0.0
    %549 = vmatpush2.msra.mxu0 0.0
    %550 = vmatprep.subr.mxu0 0.0
    %551 = vmatpush2.msra.mxu0 0.0
    %552 = vmatprep.subr.mxu0 0.0
    %553 = vmatpush2.msra.mxu0 0.0
    %554 = vmatprep.subr.mxu0 0.0
    %555 = vmatpush2.msra.mxu0 0.0
    %556 = vmatprep.subr.mxu0 0.0
    %557 = vmatpush2.msra.mxu0 0.0
    %558 = vmatprep.subr.mxu0 0.0
    %559 = vmatpush2.msra.mxu0 0.0
    %560 = vmatprep.subr.mxu0 0.0
    %561 = vmatpush2.msra.mxu0 0.0
    %562 = vmatprep.subr.mxu0 0.0
    %563 = vmatpush2.msra.mxu0 0.0
    %564 = vmatprep.subr.mxu0 0.0
    %565 = vmatpush2.msra.mxu0 0.0
    %566 = vmatprep.subr.mxu0 0.0
    %567 = vmatpush2.msra.mxu0 0.0
    %568 = vmatprep.subr.mxu0 0.0
    %569 = vmatpush2.msra.mxu0 0.0
    %570 = vmatprep.subr.mxu0 0.0
    %571 = vmatpush2.msra.mxu0 0.0
    %572 = vmatprep.subr.mxu0 0.0
    %573 = vmatpush2.msra.mxu0 0.0
    %574 = vmatprep.subr.mxu0 0.0
    %575 = vmatpush2.msra.mxu0 0.0
    %576 = vmatprep.mubr.f32.mxu0 0.0
    %577 = vmatmul.mubr.f32.gmra.mxu0 %v510
    %v578 = vpop.f32.mrf.mxu0
    %v579 = vadd.f32 0.0, %v578
    %v580 = vpop.f32.mrf.mxu0
    %581 = vdwg.mxu0
    %v582 = vsel %vm120, %v508, 0.0
    %583 = vadd.xlane.f32.xlu0 %v582
    %v584 = vpop.xlane.xlu0 %583
    %v585 = vmax.f32 %v584, 1.0
    %v586 = vrcp.pop %v585
    %v587 = vmul.f32 %v579, %v586
    %vm588 = vcmp.gt.f32.partialorder %v584, 0.0
    %v589 = vsel %vm588, 1, 0
    %vm590 = vcmp.eq.s32.totalorder %v589, 1
    %v591 = vsel %vm590, %v587, %v408
    %v592 = vmul.f32 %v591, %v591
    %v593 = vsel %vm20, %v592, 0.0
    %594 = vadd.xlane.f32.xlu0 %v593
    %v595 = vpop.xlane.xlu0 %594
    %v597 = vsel %vm20, %v591, 0
    %599 = vmatprep.subr.mxu0 0.0
    %600 = vmatpush1.xpose.msra.mxu0 0.0
    %601 = vmatprep.subr.mxu0 0.0
    %602 = vmatpush1.xpose.msra.mxu0 0.0
    %603 = vmatprep.subr.mxu0 0.0
    %604 = vmatpush1.xpose.msra.mxu0 0.0
    %605 = vmatprep.subr.mxu0 0.0
    %606 = vmatpush1.xpose.msra.mxu0 0.0
    %607 = vmatprep.subr.mxu0 0.0
    %608 = vmatpush1.xpose.msra.mxu0 0.0
    %609 = vmatprep.subr.mxu0 0.0
    %610 = vmatpush1.xpose.msra.mxu0 0.0
    %611 = vmatprep.subr.mxu0 0.0
    %612 = vmatpush1.xpose.msra.mxu0 0.0
    %613 = vmatprep.subr.mxu0 0.0
    %614 = vmatpush1.xpose.msra.mxu0 0.0
    %615 = vmatprep.subr.mxu0 0.0
    %616 = vmatpush1.xpose.msra.mxu0 %v46
    %617 = vmatprep.subr.mxu0 0.0
    %618 = vmatpush1.xpose.msra.mxu0 %v43
    %619 = vmatprep.subr.mxu0 0.0
    %620 = vmatpush1.xpose.msra.mxu0 %v40
    %621 = vmatprep.subr.mxu0 0.0
    %622 = vmatpush1.xpose.msra.mxu0 %v37
    %623 = vmatprep.subr.mxu0 0.0
    %624 = vmatpush1.xpose.msra.mxu0 %v34
    %625 = vmatprep.subr.mxu0 0.0
    %626 = vmatpush1.xpose.msra.mxu0 %v31
    %627 = vmatprep.subr.mxu0 0.0
    %628 = vmatpush1.xpose.msra.mxu0 %v28
    %629 = vmatprep.subr.mxu0 0.0
    %630 = vmatpush1.xpose.msra.mxu0 %v25
    %631 = vmatprep.subr.mxu0 0.0
    %632 = vmatpush2.xpose.msra.mxu0 0.0
    %633 = vmatprep.subr.mxu0 0.0
    %634 = vmatpush2.xpose.msra.mxu0 0.0
    %635 = vmatprep.subr.mxu0 0.0
    %636 = vmatpush2.xpose.msra.mxu0 0.0
    %637 = vmatprep.subr.mxu0 0.0
    %638 = vmatpush2.xpose.msra.mxu0 0.0
    %639 = vmatprep.subr.mxu0 0.0
    %640 = vmatpush2.xpose.msra.mxu0 0.0
    %641 = vmatprep.subr.mxu0 0.0
    %642 = vmatpush2.xpose.msra.mxu0 0.0
    %643 = vmatprep.subr.mxu0 0.0
    %644 = vmatpush2.xpose.msra.mxu0 0.0
    %645 = vmatprep.subr.mxu0 0.0
    %646 = vmatpush2.xpose.msra.mxu0 0.0
    %647 = vmatprep.subr.mxu0 0.0
    %648 = vmatpush2.xpose.msra.mxu0 0.0
    %649 = vmatprep.subr.mxu0 0.0
    %650 = vmatpush2.xpose.msra.mxu0 0.0
    %651 = vmatprep.subr.mxu0 0.0
    %652 = vmatpush2.xpose.msra.mxu0 0.0
    %653 = vmatprep.subr.mxu0 0.0
    %654 = vmatpush2.xpose.msra.mxu0 0.0
    %655 = vmatprep.subr.mxu0 0.0
    %656 = vmatpush2.xpose.msra.mxu0 0.0
    %657 = vmatprep.subr.mxu0 0.0
    %658 = vmatpush2.xpose.msra.mxu0 0.0
    %659 = vmatprep.subr.mxu0 0.0
    %660 = vmatpush2.xpose.msra.mxu0 0.0
    %661 = vmatprep.subr.mxu0 0.0
    %662 = vmatpush2.xpose.msra.mxu0 0.0
    %663 = vmatprep.mubr.f32.mxu0 0.0
    %664 = vmatmul.mubr.f32.gmra.mxu0 %v597
    %v665 = vpop.f32.mrf.mxu0
    %v666 = vadd.f32 0.0, %v665
    %v667 = vpop.f32.mrf.mxu0
    %668 = vdwg.mxu0
    %v669 = vmul.f32 %v666, 2.0
    %v670 = vsub.f32 %v595, %v669
    %v671 = vsel %vm120, %v670, inf
    %v672 = vrot.slane %v671, 4
    %vm673 = vcmp.le.f32.partialorder %v671, %v672
    %v674 = vsel %vm673, %v671, %v672
    %v675 = vsel %vm673, %v18, %v123
    %v676 = vrot.slane %v674, 6
    %v677 = vrot.slane %v675, 6
    %vm678 = vcmp.le.f32.partialorder %v674, %v676
    %v679 = vsel %vm678, %v674, %v676
    %v680 = vsel %vm678, %v675, %v677
    %v681 = vrot.slane %v679, 7
    %v682 = vrot.slane %v680, 7
    %vm683 = vcmp.le.f32.partialorder %v679, %v681
    %v684 = vsel %vm683, %v680, %v682
    %v685 = vlaneseq
    %v686 = vshrl.u32 %v685, 7
    %v687 = vsub.s32 0, %v686
    %v688 = vrot.slane %v684, %v687
    %vm689 = vcmp.eq.s32.totalorder %v688, %v18
    %v690 = vsel %vm689, 1, 0
    %v691 = vcvt.s32.f32 %v690
    %v693 = vsel %vm120, %v691, 0
    %695 = vmatprep.subr.mxu0 0.0
    %696 = vmatpush1.msra.mxu0 0.0
    %697 = vmatprep.subr.mxu0 0.0
    %698 = vmatpush1.msra.mxu0 0.0
    %699 = vmatprep.subr.mxu0 0.0
    %700 = vmatpush1.msra.mxu0 0.0
    %701 = vmatprep.subr.mxu0 0.0
    %702 = vmatpush1.msra.mxu0 0.0
    %703 = vmatprep.subr.mxu0 0.0
    %704 = vmatpush1.msra.mxu0 0.0
    %705 = vmatprep.subr.mxu0 0.0
    %706 = vmatpush1.msra.mxu0 0.0
    %707 = vmatprep.subr.mxu0 0.0
    %708 = vmatpush1.msra.mxu0 0.0
    %709 = vmatprep.subr.mxu0 0.0
    %710 = vmatpush1.msra.mxu0 0.0
    %711 = vmatprep.subr.mxu0 0.0
    %712 = vmatpush1.msra.mxu0 %v16
    %713 = vmatprep.subr.mxu0 0.0
    %714 = vmatpush1.msra.mxu0 %v15
    %715 = vmatprep.subr.mxu0 0.0
    %716 = vmatpush1.msra.mxu0 %v14
    %717 = vmatprep.subr.mxu0 0.0
    %718 = vmatpush1.msra.mxu0 %v13
    %719 = vmatprep.subr.mxu0 0.0
    %720 = vmatpush1.msra.mxu0 %v12
    %721 = vmatprep.subr.mxu0 0.0
    %722 = vmatpush1.msra.mxu0 %v11
    %723 = vmatprep.subr.mxu0 0.0
    %724 = vmatpush1.msra.mxu0 %v10
    %725 = vmatprep.subr.mxu0 0.0
    %726 = vmatpush1.msra.mxu0 %v9
    %727 = vmatprep.subr.mxu0 0.0
    %728 = vmatpush2.msra.mxu0 0.0
    %729 = vmatprep.subr.mxu0 0.0
    %730 = vmatpush2.msra.mxu0 0.0
    %731 = vmatprep.subr.mxu0 0.0
    %732 = vmatpush2.msra.mxu0 0.0
    %733 = vmatprep.subr.mxu0 0.0
    %734 = vmatpush2.msra.mxu0 0.0
    %735 = vmatprep.subr.mxu0 0.0
    %736 = vmatpush2.msra.mxu0 0.0
    %737 = vmatprep.subr.mxu0 0.0
    %738 = vmatpush2.msra.mxu0 0.0
    %739 = vmatprep.subr.mxu0 0.0
    %740 = vmatpush2.msra.mxu0 0.0
    %741 = vmatprep.subr.mxu0 0.0
    %742 = vmatpush2.msra.mxu0 0.0
    %743 = vmatprep.subr.mxu0 0.0
    %744 = vmatpush2.msra.mxu0 0.0
    %745 = vmatprep.subr.mxu0 0.0
    %746 = vmatpush2.msra.mxu0 0.0
    %747 = vmatprep.subr.mxu0 0.0
    %748 = vmatpush2.msra.mxu0 0.0
    %749 = vmatprep.subr.mxu0 0.0
    %750 = vmatpush2.msra.mxu0 0.0
    %751 = vmatprep.subr.mxu0 0.0
    %752 = vmatpush2.msra.mxu0 0.0
    %753 = vmatprep.subr.mxu0 0.0
    %754 = vmatpush2.msra.mxu0 0.0
    %755 = vmatprep.subr.mxu0 0.0
    %756 = vmatpush2.msra.mxu0 0.0
    %757 = vmatprep.subr.mxu0 0.0
    %758 = vmatpush2.msra.mxu0 0.0
    %759 = vmatprep.mubr.f32.mxu0 0.0
    %760 = vmatmul.mubr.f32.gmra.mxu0 %v693
    %v761 = vpop.f32.mrf.mxu0
    %v762 = vadd.f32 0.0, %v761
    %v763 = vpop.f32.mrf.mxu0
    %764 = vdwg.mxu0
    %v765 = vsel %vm120, %v691, 0.0
    %766 = vadd.xlane.f32.xlu0 %v765
    %v767 = vpop.xlane.xlu0 %766
    %v768 = vmax.f32 %v767, 1.0
    %v769 = vrcp.pop %v768
    %v770 = vmul.f32 %v762, %v769
    %vm771 = vcmp.gt.f32.partialorder %v767, 0.0
    %v772 = vsel %vm771, 1, 0
    %vm773 = vcmp.eq.s32.totalorder %v772, 1
    %v774 = vsel %vm773, %v770, %v591
    %v775 = vmul.f32 %v774, %v774
    %v776 = vsel %vm20, %v775, 0.0
    %777 = vadd.xlane.f32.xlu0 %v776
    %v778 = vpop.xlane.xlu0 %777
    %v780 = vsel %vm20, %v774, 0
    %782 = vmatprep.subr.mxu0 0.0
    %783 = vmatpush1.xpose.msra.mxu0 0.0
    %784 = vmatprep.subr.mxu0 0.0
    %785 = vmatpush1.xpose.msra.mxu0 0.0
    %786 = vmatprep.subr.mxu0 0.0
    %787 = vmatpush1.xpose.msra.mxu0 0.0
    %788 = vmatprep.subr.mxu0 0.0
    %789 = vmatpush1.xpose.msra.mxu0 0.0
    %790 = vmatprep.subr.mxu0 0.0
    %791 = vmatpush1.xpose.msra.mxu0 0.0
    %792 = vmatprep.subr.mxu0 0.0
    %793 = vmatpush1.xpose.msra.mxu0 0.0
    %794 = vmatprep.subr.mxu0 0.0
    %795 = vmatpush1.xpose.msra.mxu0 0.0
    %796 = vmatprep.subr.mxu0 0.0
    %797 = vmatpush1.xpose.msra.mxu0 0.0
    %798 = vmatprep.subr.mxu0 0.0
    %799 = vmatpush1.xpose.msra.mxu0 %v46
    %800 = vmatprep.subr.mxu0 0.0
    %801 = vmatpush1.xpose.msra.mxu0 %v43
    %802 = vmatprep.subr.mxu0 0.0
    %803 = vmatpush1.xpose.msra.mxu0 %v40
    %804 = vmatprep.subr.mxu0 0.0
    %805 = vmatpush1.xpose.msra.mxu0 %v37
    %806 = vmatprep.subr.mxu0 0.0
    %807 = vmatpush1.xpose.msra.mxu0 %v34
    %808 = vmatprep.subr.mxu0 0.0
    %809 = vmatpush1.xpose.msra.mxu0 %v31
    %810 = vmatprep.subr.mxu0 0.0
    %811 = vmatpush1.xpose.msra.mxu0 %v28
    %812 = vmatprep.subr.mxu0 0.0
    %813 = vmatpush1.xpose.msra.mxu0 %v25
    %814 = vmatprep.subr.mxu0 0.0
    %815 = vmatpush2.xpose.msra.mxu0 0.0
    %816 = vmatprep.subr.mxu0 0.0
    %817 = vmatpush2.xpose.msra.mxu0 0.0
    %818 = vmatprep.subr.mxu0 0.0
    %819 = vmatpush2.xpose.msra.mxu0 0.0
    %820 = vmatprep.subr.mxu0 0.0
    %821 = vmatpush2.xpose.msra.mxu0 0.0
    %822 = vmatprep.subr.mxu0 0.0
    %823 = vmatpush2.xpose.msra.mxu0 0.0
    %824 = vmatprep.subr.mxu0 0.0
    %825 = vmatpush2.xpose.msra.mxu0 0.0
    %826 = vmatprep.subr.mxu0 0.0
    %827 = vmatpush2.xpose.msra.mxu0 0.0
    %828 = vmatprep.subr.mxu0 0.0
    %829 = vmatpush2.xpose.msra.mxu0 0.0
    %830 = vmatprep.subr.mxu0 0.0
    %831 = vmatpush2.xpose.msra.mxu0 0.0
    %832 = vmatprep.subr.mxu0 0.0
    %833 = vmatpush2.xpose.msra.mxu0 0.0
    %834 = vmatprep.subr.mxu0 0.0
    %835 = vmatpush2.xpose.msra.mxu0 0.0
    %836 = vmatprep.subr.mxu0 0.0
    %837 = vmatpush2.xpose.msra.mxu0 0.0
    %838 = vmatprep.subr.mxu0 0.0
    %839 = vmatpush2.xpose.msra.mxu0 0.0
    %840 = vmatprep.subr.mxu0 0.0
    %841 = vmatpush2.xpose.msra.mxu0 0.0
    %842 = vmatprep.subr.mxu0 0.0
    %843 = vmatpush2.xpose.msra.mxu0 0.0
    %844 = vmatprep.subr.mxu0 0.0
    %845 = vmatpush2.xpose.msra.mxu0 0.0
    %846 = vmatprep.mubr.f32.mxu0 0.0
    %847 = vmatmul.mubr.f32.gmra.mxu0 %v780
    %v848 = vpop.f32.mrf.mxu0
    %v849 = vadd.f32 0.0, %v848
    %v850 = vpop.f32.mrf.mxu0
    %851 = vdwg.mxu0
    %v852 = vmul.f32 %v849, 2.0
    %v853 = vsub.f32 %v778, %v852
    %v854 = vsel %vm120, %v853, inf
    %v855 = vrot.slane %v854, 4
    %vm856 = vcmp.le.f32.partialorder %v854, %v855
    %v857 = vsel %vm856, %v854, %v855
    %v858 = vsel %vm856, %v18, %v123
    %v859 = vrot.slane %v857, 6
    %v860 = vrot.slane %v858, 6
    %vm861 = vcmp.le.f32.partialorder %v857, %v859
    %v862 = vsel %vm861, %v857, %v859
    %v863 = vsel %vm861, %v858, %v860
    %v864 = vrot.slane %v862, 7
    %v865 = vrot.slane %v863, 7
    %vm866 = vcmp.le.f32.partialorder %v862, %v864
    %v867 = vsel %vm866, %v863, %v865
    %v868 = vlaneseq
    %v869 = vshrl.u32 %v868, 7
    %v870 = vsub.s32 0, %v869
    %v871 = vrot.slane %v867, %v870
    %vm872 = vcmp.eq.s32.totalorder %v871, %v18
    %v873 = vsel %vm872, 1, 0
    %v874 = vcvt.s32.f32 %v873
    %v876 = vsel %vm120, %v874, 0
    %878 = vmatprep.subr.mxu0 0.0
    %879 = vmatpush1.msra.mxu0 0.0
    %880 = vmatprep.subr.mxu0 0.0
    %881 = vmatpush1.msra.mxu0 0.0
    %882 = vmatprep.subr.mxu0 0.0
    %883 = vmatpush1.msra.mxu0 0.0
    %884 = vmatprep.subr.mxu0 0.0
    %885 = vmatpush1.msra.mxu0 0.0
    %886 = vmatprep.subr.mxu0 0.0
    %887 = vmatpush1.msra.mxu0 0.0
    %888 = vmatprep.subr.mxu0 0.0
    %889 = vmatpush1.msra.mxu0 0.0
    %890 = vmatprep.subr.mxu0 0.0
    %891 = vmatpush1.msra.mxu0 0.0
    %892 = vmatprep.subr.mxu0 0.0
    %893 = vmatpush1.msra.mxu0 0.0
    %894 = vmatprep.subr.mxu0 0.0
    %895 = vmatpush1.msra.mxu0 %v16
    %896 = vmatprep.subr.mxu0 0.0
    %897 = vmatpush1.msra.mxu0 %v15
    %898 = vmatprep.subr.mxu0 0.0
    %899 = vmatpush1.msra.mxu0 %v14
    %900 = vmatprep.subr.mxu0 0.0
    %901 = vmatpush1.msra.mxu0 %v13
    %902 = vmatprep.subr.mxu0 0.0
    %903 = vmatpush1.msra.mxu0 %v12
    %904 = vmatprep.subr.mxu0 0.0
    %905 = vmatpush1.msra.mxu0 %v11
    %906 = vmatprep.subr.mxu0 0.0
    %907 = vmatpush1.msra.mxu0 %v10
    %908 = vmatprep.subr.mxu0 0.0
    %909 = vmatpush1.msra.mxu0 %v9
    %910 = vmatprep.subr.mxu0 0.0
    %911 = vmatpush2.msra.mxu0 0.0
    %912 = vmatprep.subr.mxu0 0.0
    %913 = vmatpush2.msra.mxu0 0.0
    %914 = vmatprep.subr.mxu0 0.0
    %915 = vmatpush2.msra.mxu0 0.0
    %916 = vmatprep.subr.mxu0 0.0
    %917 = vmatpush2.msra.mxu0 0.0
    %918 = vmatprep.subr.mxu0 0.0
    %919 = vmatpush2.msra.mxu0 0.0
    %920 = vmatprep.subr.mxu0 0.0
    %921 = vmatpush2.msra.mxu0 0.0
    %922 = vmatprep.subr.mxu0 0.0
    %923 = vmatpush2.msra.mxu0 0.0
    %924 = vmatprep.subr.mxu0 0.0
    %925 = vmatpush2.msra.mxu0 0.0
    %926 = vmatprep.subr.mxu0 0.0
    %927 = vmatpush2.msra.mxu0 0.0
    %928 = vmatprep.subr.mxu0 0.0
    %929 = vmatpush2.msra.mxu0 0.0
    %930 = vmatprep.subr.mxu0 0.0
    %931 = vmatpush2.msra.mxu0 0.0
    %932 = vmatprep.subr.mxu0 0.0
    %933 = vmatpush2.msra.mxu0 0.0
    %934 = vmatprep.subr.mxu0 0.0
    %935 = vmatpush2.msra.mxu0 0.0
    %936 = vmatprep.subr.mxu0 0.0
    %937 = vmatpush2.msra.mxu0 0.0
    %938 = vmatprep.subr.mxu0 0.0
    %939 = vmatpush2.msra.mxu0 0.0
    %940 = vmatprep.subr.mxu0 0.0
    %941 = vmatpush2.msra.mxu0 0.0
    %942 = vmatprep.mubr.f32.mxu0 0.0
    %943 = vmatmul.mubr.f32.gmra.mxu0 %v876
    %v944 = vpop.f32.mrf.mxu0
    %v945 = vadd.f32 0.0, %v944
    %v946 = vpop.f32.mrf.mxu0
    %947 = vdwg.mxu0
    %v948 = vsel %vm120, %v874, 0.0
    %949 = vadd.xlane.f32.xlu0 %v948
    %v950 = vpop.xlane.xlu0 %949
    %v951 = vmax.f32 %v950, 1.0
    %v952 = vrcp.pop %v951
    %v953 = vmul.f32 %v945, %v952
    %vm954 = vcmp.gt.f32.partialorder %v950, 0.0
    %v955 = vsel %vm954, 1, 0
    %vm956 = vcmp.eq.s32.totalorder %v955, 1
    %v957 = vsel %vm956, %v953, %v774
    %vm958 = vcmask 256002
    %959 = vst.msk [vmem:[#allocation2 - $0x2] sm:$0x4] %vm958, %v957
    // Predicated region
    $region6: #{tpu_custom_call.1} parent=1 // pred_check
      _
    $region7: #{tpu_custom_call.1} parent=1 // pred_check_branch
      %961 = sbr.rel (0) target = $region9
    $region8: #{tpu_custom_call.1} parent=1 // pred_region
      %s963 = ssub.s32 16, 16
      %964 = vsyncadd [#allocation3], %s963
      %s966 = sshll.u32 [#allocation2], 4
      %s967 = int_to_ptr.vmem [resolvable:$true] %s966
      %969 = dma.vmem_to_hbm [thread:$0]  %s967, 16, %s1, [#allocation3]
    $region9: #{tpu_custom_call.1} parent=1 // pred_fallthru
      _
    // Predicated region
    $region10: #{tpu_custom_call.1} parent=1 // pred_check
      _
    $region11: #{tpu_custom_call.1} parent=1 // pred_check_branch
      %971 = sbr.rel (0) target = $region13
    $region12: #{tpu_custom_call.1} parent=1 // pred_region
      %972 = dma.done [#allocation3], 16
    $region13: #{tpu_custom_call.1} parent=1 // pred_fallthru
      _
    %973 = vsyncpa [#allocation3], 1

</llo_original>
